<compile_context>
chip_gen: v6e
topology: v6e:2x2x1
jax: 0.10.0
libtpu: 0.0.40
codegen_flags: <defaults>
</compile_context>

<pallas_src>
import functools

import jax
import jax.numpy as jnp
from jax.experimental import pallas as pl
from jax.experimental.pallas import tpu as pltpu


def _round_up(x, m):
    return ((x + m - 1) // m) * m


def _pad2(x, rows, cols):
    return jnp.pad(x, ((0, rows - x.shape[0]), (0, cols - x.shape[1])))


def _gat_kernel(flags_ref, uq_ref, uk_ref, sk_ref, adj_ref, a_ref, out_ref,
                m_scr, l_scr, sq1_scr, acc_scr, *, alpha):
    """Online-softmax GAT tile: (query tile i) x (key tile k)."""
    i = pl.program_id(0)
    k = pl.program_id(1)
    nk = pl.num_programs(1)

    def leaky(x):
        return jnp.where(x > 0, x, alpha * x)

    # ---- init at first key block: fold in the "self" (ones) column --------
    @pl.when(k == 0)
    def _init():
        uq = uq_ref[...]                                        # (tq, D) bf16
        sq = jnp.dot(uq, a_ref[...],
                     preferred_element_type=jnp.float32)        # (tq, 2)
        sq1 = sq[:, 0:1]                                        # q @ a[:D]
        sq2 = sq[:, 1:2]                                        # q @ a[D:]
        e_self = leaky(sq1 + sq2)                               # (tq, 1)
        sq1_scr[...] = sq1
        m_scr[...] = e_self                                     # running max
        l_scr[...] = jnp.full(l_scr.shape, 1.0, jnp.float32)    # exp(self-m)=1
        acc_scr[...] = uq.astype(jnp.float32)                   # 1.0 * U_q

    # ---- cross scores for this key tile (skipped if adjacency block empty) --
    @pl.when(flags_ref[i * nk + k] > 0)
    def _cross():
        adjf = adj_ref[...].astype(jnp.float32)                 # (tq, tk)
        s = leaky(sq1_scr[...] + sk_ref[...])                   # (tq,1)+(1,tk)
        s = jnp.where(adjf > 0, s, jnp.float32(-9.0e15))

        m_prev = m_scr[...]
        m_new = jnp.maximum(m_prev, jnp.max(s, axis=-1, keepdims=True))
        corr = jnp.exp(m_prev - m_new)
        p = jnp.exp(s - m_new)                                  # (tq, tk); 0 at masked

        l_scr[...] = corr * l_scr[...] + jnp.sum(p, axis=-1, keepdims=True)
        pv = jnp.dot(p.astype(jnp.bfloat16), uk_ref[...],
                     preferred_element_type=jnp.float32)        # (tq, D)
        acc_scr[...] = corr * acc_scr[...] + pv
        m_scr[...] = m_new

    # ---- finalize: normalize + ELU -----------------------------------------
    @pl.when(k == nk - 1)
    def _finalize():
        inv = pl.reciprocal(l_scr[...], approx=True)
        h = acc_scr[...] * inv
        out_ref[...] = jnp.where(h > 0, h, jnp.exp(h) - 1.0).astype(out_ref.dtype)


def gat_forward(query, key, adj_cross, a, alpha=0.2, tq=512, tk=1024):
    """One branch of GraphAttentionLayer.forward.

    query:     (Nq, D)        e.g. U_9  for version == 'mimiciv_icd9'
    key:       (Nk, D)        e.g. U_10
    adj_cross: (Nq, Nk) int8  adjacency WITHOUT the prepended ones column
    a:         (2D, 1)        attention vector
    returns:   (Nq, D) f32    elu(h_prime)
    """
    Nq, D = query.shape
    Nk, Dk = key.shape
    assert D == Dk and a.shape == (2 * D, 1)
    assert tq % 8 == 0 and tk % 128 == 0

    # lane-dense padded shapes
    D_pad = _round_up(D, 128)
    tq_eff = min(tq, _round_up(Nq, 8))
    Nq_pad = _round_up(Nq, tq_eff)
    tk_eff = min(tk, _round_up(Nk, 128))
    Nk_pad = _round_up(Nk, tk_eff)

    a1 = a[:D, :].astype(jnp.float32)                       # (D, 1)
    a2 = a[D:, :].astype(jnp.float32)                       # (D, 1)

    # grid-invariant key-side score hoisted out of the grid: sk[j] = K[j] @ a2
    sk = (key.astype(jnp.float32) @ a2).reshape(1, Nk)      # (1, Nk)
    sk = jnp.pad(sk, ((0, 0), (0, Nk_pad - Nk)))

    # fused attention vector (D, 2): one MXU dot gives both query scores
    a_cat = jnp.pad(jnp.concatenate([a1, a2], axis=1),
                    ((0, D_pad - D), (0, 0))).astype(jnp.bfloat16)

    q_p = _pad2(query.astype(jnp.bfloat16), Nq_pad, D_pad)
    k_p = _pad2(key.astype(jnp.bfloat16), Nk_pad, D_pad)
    adj_p = _pad2(adj_cross.astype(jnp.int8), Nq_pad, Nk_pad)

    nqb = Nq_pad // tq_eff
    nkb = Nk_pad // tk_eff

    # per-(query tile, key tile) nonzero flags (scalar prefetch, SMEM):
    # empty adjacency blocks skip the exp/MXU work in-kernel.
    blk = adj_p.reshape(nqb, tq_eff, nkb, tk_eff).astype(jnp.int32)
    flags = (blk.sum(axis=(1, 3)) > 0).astype(jnp.int32).reshape(-1)

    grid = (nqb, nkb)
    kernel = functools.partial(_gat_kernel, alpha=alpha)

    out = pl.pallas_call(
        kernel,
        out_shape=jax.ShapeDtypeStruct((Nq_pad, D_pad), jnp.float32),
        grid_spec=pltpu.PrefetchScalarGridSpec(
            num_scalar_prefetch=1,
            grid=grid,
            in_specs=[
                pl.BlockSpec((tq_eff, D_pad), lambda i, k, f: (i, 0)),   # query tile
                pl.BlockSpec((tk_eff, D_pad), lambda i, k, f: (k, 0)),   # key tile
                pl.BlockSpec((1, tk_eff), lambda i, k, f: (0, k)),       # key @ a2
                pl.BlockSpec((tq_eff, tk_eff), lambda i, k, f: (i, k)),  # adjacency
                pl.BlockSpec((D_pad, 2), lambda i, k, f: (0, 0)),        # [a1|a2]
            ],
            out_specs=pl.BlockSpec((tq_eff, D_pad), lambda i, k, f: (i, 0)),
            scratch_shapes=[
                pltpu.VMEM((tq_eff, 1), jnp.float32),        # running max m
                pltpu.VMEM((tq_eff, 1), jnp.float32),        # running denom l
                pltpu.VMEM((tq_eff, 1), jnp.float32),        # q @ a1
                pltpu.VMEM((tq_eff, D_pad), jnp.float32),    # output accumulator
            ]),
        compiler_params=pltpu.CompilerParams(
            dimension_semantics=("parallel", "arbitrary"),
            vmem_limit_bytes=32 * 1024 * 1024),
    )(flags, q_p, k_p, sk, adj_p, a_cat)

    return out[:Nq, :D]


def gat_reference(query, key, adj_cross, a, alpha=0.2):
    """Pure-JAX f32 reference mirroring the PyTorch forward (dense-equivalent)."""
    D = query.shape[1]
    a1 = a[:D, 0]
    a2 = a[D:, 0]
    leaky = lambda x: jnp.where(x > 0, x, alpha * x)
    sq1 = query @ a1
    sq2 = query @ a2
    sk = key @ a2
    e_self = leaky(sq1 + sq2)[:, None]
    e_cross = leaky(sq1[:, None] + sk[None, :])
    e = jnp.concatenate([e_self, e_cross], axis=1)
    adj_aug = jnp.concatenate(
        [jnp.ones((query.shape[0], 1), jnp.float32), adj_cross], axis=1)
    att = jnp.where(adj_aug > 0, e, -9.0e15)
    att = jax.nn.softmax(att, axis=-1)
    att = att * adj_aug
    att = jnp.where(jnp.isnan(att), 0.0, att)
    h = att[:, :1] * query + att[:, 1:] @ key
    return jnp.where(h > 0, h, jnp.exp(h) - 1.0)


if __name__ == "__main__":
    rng = jax.random.PRNGKey(0)
    k1, k2, k3, k4, k5, k6 = jax.random.split(rng, 6)

    # small shapes consistent with the module (out_features == in_features)
    in_features = out_features = 32
    n_icd9, n_icd10 = 16, 24
    alpha = 0.2

    # deterministic parameter init (normal(0, 0.03) for U_*, xavier-ish for a)
    U9 = 0.03 * jax.random.normal(k1, (n_icd9, in_features), jnp.float32)
    U10 = 0.03 * jax.random.normal(k2, (n_icd10, in_features), jnp.float32)
    limit = 1.414 * (6.0 / (2 * out_features + 1)) ** 0.5
    a = jax.random.uniform(k3, (2 * out_features, 1), jnp.float32, -limit, limit)

    # synthetic binary adjacency matrices (stand-ins for the .npy files)
    adj_9to10 = jax.random.bernoulli(k4, 0.3, (n_icd9, n_icd10)).astype(jnp.int8)
    adj_10to9 = jax.random.bernoulli(k5, 0.3, (n_icd10, n_icd9)).astype(jnp.int8)

    # version == 'mimiciv_icd9'
    out9 = gat_forward(U9, U10, adj_9to10, a, alpha)
    # version == 'mimiciv_icd10' (else branch)
    out10 = gat_forward(U10, U9, adj_10to9, a, alpha)
    jax.block_until_ready((out9, out10))

    ref9 = gat_reference(U9, U10, adj_9to10.astype(jnp.float32), a, alpha)
    ref10 = gat_reference(U10, U9, adj_10to9.astype(jnp.float32), a, alpha)
    assert out9.shape == (n_icd9, in_features)
    assert out10.shape == (n_icd10, in_features)
    # bf16 matmul operands + approx reciprocal -> slightly looser tolerance
    assert jnp.allclose(out9, ref9, atol=2e-3, rtol=2e-2), \
        f"max err {jnp.max(jnp.abs(out9 - ref9))}"
    assert jnp.allclose(out10, ref10, atol=2e-3, rtol=2e-2), \
        f"max err {jnp.max(jnp.abs(out10 - ref10))}"

    # multi-tile path: several key/query tiles (exercises the online softmax
    # across the k axis), an all-zero adjacency key block (exercises the
    # prefetch-flag skip), and a fully isolated query row (self-only softmax).
    nq2, nk2 = 40, 300
    Uq2 = 0.03 * jax.random.normal(k6, (nq2, in_features), jnp.float32)
    Uk2 = 0.03 * jax.random.normal(k1, (nk2, in_features), jnp.float32)
    adj2 = jax.random.bernoulli(k2, 0.05, (nq2, nk2)).astype(jnp.int8)
    adj2 = adj2.at[:, 128:256].set(0)   # whole key tile empty -> flag skip
    adj2 = adj2.at[3, :].set(0)         # isolated query row -> self-attn only
    out2 = gat_forward(Uq2, Uk2, adj2, a, alpha, tq=16, tk=128)
    jax.block_until_ready(out2)
    ref2 = gat_reference(Uq2, Uk2, adj2.astype(jnp.float32), a, alpha)
    assert out2.shape == (nq2, in_features)
    assert jnp.allclose(out2, ref2, atol=2e-3, rtol=2e-2), \
        f"max err {jnp.max(jnp.abs(out2 - ref2))}"

    print("KERNEL_OK")
</pallas_src>

<mosaic_0001>
module attributes {stable_mosaic.version = 11 : i64} {
  func.func @_gat_kernel(%arg0: i32, %arg1: i32, %arg2: memref<1xi32, #tpu.memory_space<smem>>, %arg3: memref<16x128xbf16, #tpu.memory_space<vmem>>, %arg4: memref<128x128xbf16, #tpu.memory_space<vmem>>, %arg5: memref<1x128xf32, #tpu.memory_space<vmem>>, %arg6: memref<16x128xi8, #tpu.memory_space<vmem>>, %arg7: memref<128x2xbf16, #tpu.memory_space<vmem>>, %arg8: memref<16x128xf32, #tpu.memory_space<vmem>>, %arg9: memref<16x1xf32, #tpu.memory_space<vmem>>, %arg10: memref<16x1xf32, #tpu.memory_space<vmem>>, %arg11: memref<16x1xf32, #tpu.memory_space<vmem>>, %arg12: memref<16x128xf32, #tpu.memory_space<vmem>>) attributes {dimension_semantics = [#tpu.dimension_semantics<parallel>, #tpu.dimension_semantics<arbitrary>], iteration_bounds = array<i64: 1, 1>, scalar_prefetch = 1 : i64, scratch_operands = 4 : i64, tpu.core_type = #tpu.core_type<tc>, window_params = [{transform_indices = @transform_0, window_bounds = array<i64: 16, 128>}, {transform_indices = @transform_1, window_bounds = array<i64: 128, 128>}, {transform_indices = @transform_2, window_bounds = array<i64: 1, 128>}, {transform_indices = @transform_3, window_bounds = array<i64: 16, 128>}, {pipeline_mode = #tpu.pipeline_mode<synchronous>, transform_indices = @transform_4, window_bounds = array<i64: 128, 2>}, {transform_indices = @transform_5, window_bounds = array<i64: 16, 128>}]} {
    %c0_i32 = arith.constant 0 : i32
    %0 = arith.cmpi eq, %arg1, %c0_i32 : i32
    %1 = arith.extui %0 : i1 to i32
    %c0_i32_0 = arith.constant 0 : i32
    %2 = arith.cmpi ne, %1, %c0_i32_0 : i32
    scf.if %2 {
      %c0 = arith.constant 0 : index
      %c0_5 = arith.constant 0 : index
      %13 = vector.load %arg3[%c0, %c0_5] : memref<16x128xbf16, #tpu.memory_space<vmem>>, vector<16x128xbf16>
      %c0_6 = arith.constant 0 : index
      %c0_7 = arith.constant 0 : index
      %14 = vector.load %arg7[%c0_6, %c0_7] : memref<128x2xbf16, #tpu.memory_space<vmem>>, vector<128x2xbf16>
      %cst = arith.constant dense<0.000000e+00> : vector<16x2xf32>
      %15 = tpu.matmul %13, %14, %cst {dimension_numbers = #tpu.dot_dimension_numbers<[1], [0], [0], [1], [0, 0, 1, 1], [], []>} : vector<16x128xbf16>, vector<128x2xbf16>, vector<16x2xf32> -> vector<16x2xf32>
      %16 = vector.extract_strided_slice %15 {offsets = [0, 0], sizes = [16, 1], strides = [1, 1]} : vector<16x2xf32> to vector<16x1xf32>
      %17 = vector.extract_strided_slice %15 {offsets = [0, 1], sizes = [16, 1], strides = [1, 1]} : vector<16x2xf32> to vector<16x1xf32>
      %18 = arith.addf %16, %17 : vector<16x1xf32>
      %cst_8 = arith.constant 0.000000e+00 : f32
      %19 = vector.broadcast %cst_8 : f32 to vector<16x1xf32>
      %20 = arith.cmpf ogt, %18, %19 : vector<16x1xf32>
      %cst_9 = arith.constant 2.000000e-01 : f32
      %21 = vector.broadcast %cst_9 : f32 to vector<16x1xf32>
      %22 = arith.mulf %21, %18 : vector<16x1xf32>
      %23 = arith.select %20, %18, %22 : vector<16x1xi1>, vector<16x1xf32>
      %c0_10 = arith.constant 0 : index
      %c0_11 = arith.constant 0 : index
      %24 = vector.load %arg11[%c0_10, %c0_11] : memref<16x1xf32, #tpu.memory_space<vmem>>, vector<16x1xf32>
      tpu.vector_store %arg11[%c0_10, %c0_11], %16 {strides = array<i32>} : memref<16x1xf32, #tpu.memory_space<vmem>>, vector<16x1xf32>,
      %c0_12 = arith.constant 0 : index
      %c0_13 = arith.constant 0 : index
      %25 = vector.load %arg9[%c0_12, %c0_13] : memref<16x1xf32, #tpu.memory_space<vmem>>, vector<16x1xf32>
      tpu.vector_store %arg9[%c0_12, %c0_13], %23 {strides = array<i32>} : memref<16x1xf32, #tpu.memory_space<vmem>>, vector<16x1xf32>,
      %cst_14 = arith.constant 1.000000e+00 : f32
      %26 = vector.broadcast %cst_14 : f32 to vector<16x1xf32>
      %c0_15 = arith.constant 0 : index
      %c0_16 = arith.constant 0 : index
      %27 = vector.load %arg10[%c0_15, %c0_16] : memref<16x1xf32, #tpu.memory_space<vmem>>, vector<16x1xf32>
      tpu.vector_store %arg10[%c0_15, %c0_16], %26 {strides = array<i32>} : memref<16x1xf32, #tpu.memory_space<vmem>>, vector<16x1xf32>,
      %28 = arith.extf %13 : vector<16x128xbf16> to vector<16x128xf32>
      %c0_17 = arith.constant 0 : index
      %c0_18 = arith.constant 0 : index
      %29 = vector.load %arg12[%c0_17, %c0_18] : memref<16x128xf32, #tpu.memory_space<vmem>>, vector<16x128xf32>
      tpu.vector_store %arg12[%c0_17, %c0_18], %28 {strides = array<i32>} : memref<16x128xf32, #tpu.memory_space<vmem>>, vector<16x128xf32>,
    } else {
    }
    %c1_i32 = arith.constant 1 : i32
    %3 = arith.muli %arg0, %c1_i32 : i32
    %4 = arith.addi %3, %arg1 : i32
    %5 = arith.index_cast %4 : i32 to index
    %6 = memref.load %arg2[%5] : memref<1xi32, #tpu.memory_space<smem>>
    %c0_i32_1 = arith.constant 0 : i32
    %7 = arith.cmpi sgt, %6, %c0_i32_1 : i32
    %8 = arith.extui %7 : i1 to i32
    %c0_i32_2 = arith.constant 0 : i32
    %9 = arith.cmpi ne, %8, %c0_i32_2 : i32
    scf.if %9 {
      %c0 = arith.constant 0 : index
      %c0_5 = arith.constant 0 : index
      %13 = vector.load %arg6[%c0, %c0_5] : memref<16x128xi8, #tpu.memory_space<vmem>>, vector<16x128xi8>
      %14 = arith.sitofp %13 : vector<16x128xi8> to vector<16x128xf32>
      %c0_6 = arith.constant 0 : index
      %c0_7 = arith.constant 0 : index
      %15 = vector.load %arg11[%c0_6, %c0_7] : memref<16x1xf32, #tpu.memory_space<vmem>>, vector<16x1xf32>
      %c0_8 = arith.constant 0 : index
      %c0_9 = arith.constant 0 : index
      %16 = vector.load %arg5[%c0_8, %c0_9] : memref<1x128xf32, #tpu.memory_space<vmem>>, vector<1x128xf32>
      %17 = vector.broadcast %15 : vector<16x1xf32> to vector<16x128xf32>
      %18 = vector.broadcast %16 : vector<1x128xf32> to vector<16x128xf32>
      %19 = arith.addf %17, %18 : vector<16x128xf32>
      %cst = arith.constant 0.000000e+00 : f32
      %20 = vector.broadcast %cst : f32 to vector<16x128xf32>
      %21 = arith.cmpf ogt, %19, %20 : vector<16x128xf32>
      %cst_10 = arith.constant 2.000000e-01 : f32
      %22 = vector.broadcast %cst_10 : f32 to vector<16x128xf32>
      %23 = arith.mulf %22, %19 : vector<16x128xf32>
      %24 = arith.select %21, %19, %23 : vector<16x128xi1>, vector<16x128xf32>
      %cst_11 = arith.constant 0.000000e+00 : f32
      %25 = vector.broadcast %cst_11 : f32 to vector<16x128xf32>
      %26 = arith.cmpf ogt, %14, %25 : vector<16x128xf32>
      %cst_12 = arith.constant -9.000000e+15 : f32
      %27 = vector.broadcast %cst_12 : f32 to vector<16x128xf32>
      %28 = arith.select %26, %24, %27 : vector<16x128xi1>, vector<16x128xf32>
      %c0_13 = arith.constant 0 : index
      %c0_14 = arith.constant 0 : index
      %29 = vector.load %arg9[%c0_13, %c0_14] : memref<16x1xf32, #tpu.memory_space<vmem>>, vector<16x1xf32>
      %cst_15 = arith.constant dense<0xFF800000> : vector<16xf32>
      %30 = vector.multi_reduction <maximumf>, %28, %cst_15 [1] : vector<16x128xf32> to vector<16xf32>
      %31 = vector.shape_cast %30 : vector<16xf32> to vector<16x1xf32>
      %32 = arith.maximumf %29, %31 : vector<16x1xf32>
      %33 = arith.subf %29, %32 : vector<16x1xf32>
      %34 = math.exp %33 : vector<16x1xf32>
      %35 = vector.broadcast %32 : vector<16x1xf32> to vector<16x128xf32>
      %36 = arith.subf %28, %35 : vector<16x128xf32>
      %37 = math.exp %36 : vector<16x128xf32>
      %c0_16 = arith.constant 0 : index
      %c0_17 = arith.constant 0 : index
      %38 = vector.load %arg10[%c0_16, %c0_17] : memref<16x1xf32, #tpu.memory_space<vmem>>, vector<16x1xf32>
      %39 = arith.mulf %34, %38 : vector<16x1xf32>
      %cst_18 = arith.constant dense<0.000000e+00> : vector<16xf32>
      %40 = vector.multi_reduction <add>, %37, %cst_18 [1] : vector<16x128xf32> to vector<16xf32>
      %41 = vector.shape_cast %40 : vector<16xf32> to vector<16x1xf32>
      %42 = arith.addf %39, %41 : vector<16x1xf32>
      %c0_19 = arith.constant 0 : index
      %c0_20 = arith.constant 0 : index
      %43 = vector.load %arg10[%c0_19, %c0_20] : memref<16x1xf32, #tpu.memory_space<vmem>>, vector<16x1xf32>
      tpu.vector_store %arg10[%c0_19, %c0_20], %42 {strides = array<i32>} : memref<16x1xf32, #tpu.memory_space<vmem>>, vector<16x1xf32>,
      %44 = arith.truncf %37 : vector<16x128xf32> to vector<16x128xbf16>
      %c0_21 = arith.constant 0 : index
      %c0_22 = arith.constant 0 : index
      %45 = vector.load %arg4[%c0_21, %c0_22] : memref<128x128xbf16, #tpu.memory_space<vmem>>, vector<128x128xbf16>
      %cst_23 = arith.constant dense<0.000000e+00> : vector<16x128xf32>
      %46 = tpu.matmul %44, %45, %cst_23 {dimension_numbers = #tpu.dot_dimension_numbers<[1], [0], [0], [1], [0, 0, 1, 1], [], []>} : vector<16x128xbf16>, vector<128x128xbf16>, vector<16x128xf32> -> vector<16x128xf32>
      %c0_24 = arith.constant 0 : index
      %c0_25 = arith.constant 0 : index
      %47 = vector.load %arg12[%c0_24, %c0_25] : memref<16x128xf32, #tpu.memory_space<vmem>>, vector<16x128xf32>
      %48 = vector.broadcast %34 : vector<16x1xf32> to vector<16x128xf32>
      %49 = arith.mulf %48, %47 : vector<16x128xf32>
      %50 = arith.addf %49, %46 : vector<16x128xf32>
      %c0_26 = arith.constant 0 : index
      %c0_27 = arith.constant 0 : index
      %51 = vector.load %arg12[%c0_26, %c0_27] : memref<16x128xf32, #tpu.memory_space<vmem>>, vector<16x128xf32>
      tpu.vector_store %arg12[%c0_26, %c0_27], %50 {strides = array<i32>} : memref<16x128xf32, #tpu.memory_space<vmem>>, vector<16x128xf32>,
      %c0_28 = arith.constant 0 : index
      %c0_29 = arith.constant 0 : index
      %52 = vector.load %arg9[%c0_28, %c0_29] : memref<16x1xf32, #tpu.memory_space<vmem>>, vector<16x1xf32>
      tpu.vector_store %arg9[%c0_28, %c0_29], %32 {strides = array<i32>} : memref<16x1xf32, #tpu.memory_space<vmem>>, vector<16x1xf32>,
    } else {
    }
    %c0_i32_3 = arith.constant 0 : i32
    %10 = arith.cmpi eq, %arg1, %c0_i32_3 : i32
    %11 = arith.extui %10 : i1 to i32
    %c0_i32_4 = arith.constant 0 : i32
    %12 = arith.cmpi ne, %11, %c0_i32_4 : i32
    scf.if %12 {
      %c0 = arith.constant 0 : index
      %c0_5 = arith.constant 0 : index
      %13 = vector.load %arg10[%c0, %c0_5] : memref<16x1xf32, #tpu.memory_space<vmem>>, vector<16x1xf32>
      %14 = tpu.reciprocal %13 {approx = true} : vector<16x1xf32> -> vector<16x1xf32>
      %c0_6 = arith.constant 0 : index
      %c0_7 = arith.constant 0 : index
      %15 = vector.load %arg12[%c0_6, %c0_7] : memref<16x128xf32, #tpu.memory_space<vmem>>, vector<16x128xf32>
      %16 = vector.broadcast %14 : vector<16x1xf32> to vector<16x128xf32>
      %17 = arith.mulf %15, %16 : vector<16x128xf32>
      %cst = arith.constant 0.000000e+00 : f32
      %18 = vector.broadcast %cst : f32 to vector<16x128xf32>
      %19 = arith.cmpf ogt, %17, %18 : vector<16x128xf32>
      %20 = math.exp %17 : vector<16x128xf32>
      %cst_8 = arith.constant 1.000000e+00 : f32
      %21 = vector.broadcast %cst_8 : f32 to vector<16x128xf32>
      %22 = arith.subf %20, %21 : vector<16x128xf32>
      %23 = arith.select %19, %17, %22 : vector<16x128xi1>, vector<16x128xf32>
      %c0_9 = arith.constant 0 : index
      %c0_10 = arith.constant 0 : index
      %24 = vector.load %arg8[%c0_9, %c0_10] : memref<16x128xf32, #tpu.memory_space<vmem>>, vector<16x128xf32>
      tpu.vector_store %arg8[%c0_9, %c0_10], %23 {strides = array<i32>} : memref<16x128xf32, #tpu.memory_space<vmem>>, vector<16x128xf32>,
    } else {
    }
    return
  }
  func.func @transform_0(%arg0: i32, %arg1: i32, %arg2: memref<1xi32, #tpu.memory_space<smem>>) -> (i32, i32) {
    %c0_i32 = arith.constant 0 : i32
    %c0_i32_0 = arith.constant 0 : i32
    return %arg0, %c0_i32 : i32, i32
  }
  func.func @transform_1(%arg0: i32, %arg1: i32, %arg2: memref<1xi32, #tpu.memory_space<smem>>) -> (i32, i32) {
    %c0_i32 = arith.constant 0 : i32
    %c0_i32_0 = arith.constant 0 : i32
    return %arg1, %c0_i32 : i32, i32
  }
  func.func @transform_2(%arg0: i32, %arg1: i32, %arg2: memref<1xi32, #tpu.memory_space<smem>>) -> (i32, i32) {
    %c0_i32 = arith.constant 0 : i32
    %c0_i32_0 = arith.constant 0 : i32
    return %c0_i32, %arg1 : i32, i32
  }
  func.func @transform_3(%arg0: i32, %arg1: i32, %arg2: memref<1xi32, #tpu.memory_space<smem>>) -> (i32, i32) {
    %c0_i32 = arith.constant 0 : i32
    return %arg0, %arg1 : i32, i32
  }
  func.func @transform_4(%arg0: i32, %arg1: i32, %arg2: memref<1xi32, #tpu.memory_space<smem>>) -> (i32, i32) {
    %c0_i32 = arith.constant 0 : i32
    %c0_i32_0 = arith.constant 0 : i32
    %c0_i32_1 = arith.constant 0 : i32
    return %c0_i32, %c0_i32_0 : i32, i32
  }
  func.func @transform_5(%arg0: i32, %arg1: i32, %arg2: memref<1xi32, #tpu.memory_space<smem>>) -> (i32, i32) {
    %c0_i32 = arith.constant 0 : i32
    %c0_i32_0 = arith.constant 0 : i32
    return %arg0, %c0_i32 : i32, i32
  }
}

</mosaic_0001>

<llo_original>
// kernel: tpu_custom_call.1
$region0: #{tpu_custom_call.1}
  #allocation0 [shape = 'u32[]', space=smem, size = 0x4, offset = 0x4, fixed_abs, tag = 'smem constant byte address 0x4 - core index']
  #allocation1 [shape = 'u32[144,128]{1,0:T(1,128)}', space=vmem, size = 0x12000, scoped, tag = 'internal scratch']
  #allocation2 [shape = 'f32[16,1]{1,0:T(8,128)}', space=vmem, size = 0x2000, scoped, tag = 'scratch operand']
  #allocation3 [shape = 'f32[16,1]{1,0:T(8,128)}', space=vmem, size = 0x2000, scoped, tag = 'scratch operand']
  #allocation4 [shape = 'f32[16,1]{1,0:T(8,128)}', space=vmem, size = 0x2000, scoped, tag = 'scratch operand']
  #allocation5 [shape = 'f32[16,128]{1,0:T(8,128)}', space=vmem, size = 0x2000, scoped, tag = 'scratch operand']
  #allocation6 [shape = 's32[1]{0}', space=sflag, size = 0x4, scoped, tag = 'scoped memory for tpu_custom_call.1']
  #allocation7 [shape = 's32[1]{0:T(128)S(6)}', space=smem, size = 0x200, scoped, tag = 'prefetched SMEM operand 0']
  %s0 = inlined_call_operand.<no memory space> [shape: s32[1], index: 0, kind: input, shape index: {}]
  %s1 = inlined_call_operand.hbm [shape: bf16[16,128], index: 1, kind: input, shape index: {}]
  %s2 = inlined_call_operand.vmem [shape: bf16[128,128], index: 2, kind: input, shape index: {}]
  %s3 = inlined_call_operand.vmem [shape: f32[1,128], index: 3, kind: input, shape index: {}]
  %s4 = inlined_call_operand.vmem [shape: s8[16,128], index: 4, kind: input, shape index: {}]
  %s5 = inlined_call_operand.vmem [shape: bf16[128,2], index: 5, kind: input, shape index: {}]
  %s6 = inlined_call_operand.hbm [shape: f32[16,128], index: 6, kind: output, shape index: {}]
  %s7 = sld [smem:[#allocation0]]
  $region46: #{tpu_custom_call.1} parent=0
    _
  %s9 = ssub.s32 1, %s7
  %s10 = scalar_select 0, %s9, %s7
  %11 = sst [smem:[#allocation7]] %s0
  $region1: #{tpu_custom_call.1} parent=0
    #allocation8 [shape = 'u8[4096]{0}', space=vmem, size = 0x1000, scoped, tag = 'input window, operand 1, single buffered']
    #allocation9 [shape = 's32[1]{0}', space=sflag, size = 0x4, scoped, tag = 'scoped memory for tpu_custom_call.1']
    #allocation10 [shape = 's32[1]{0}', space=sflag, size = 0x4, scoped, tag = 'scoped memory for tpu_custom_call.1']
    #allocation11 [shape = 'u8[8192]{0}', space=vmem, size = 0x2000, scoped, tag = 'output window, operand 0, single buffered']
    %12 = vsyncpa [#allocation9], 0
    %13 = vsyncpa [#allocation10], 0
    // Predicated region
    $region2: #{tpu_custom_call.1} parent=1 // pred_check
      _
    $region3: #{tpu_custom_call.1} parent=1 // pred_check_branch
      %15 = sbr.rel (0) target = $region5
    $region4: #{tpu_custom_call.1} parent=1 // pred_region
      %s17 = ssub.s32 128, 128
      %18 = vsyncadd [#allocation9], %s17
      %s19 = sshll.u32 [#allocation8], 4
      %s20 = int_to_ptr.vmem [resolvable:$true] %s19
      %25 = dma.hbm_to_vmem [thread:$0]  %s1, 128, %s20, [#allocation9], 64, 64, 4
    $region5: #{tpu_custom_call.1} parent=1 // pred_fallthru
      _
    // Predicated region
    $region6: #{tpu_custom_call.1} parent=1 // pred_check
      _
    $region7: #{tpu_custom_call.1} parent=1 // pred_check_branch
      %27 = sbr.rel (0) target = $region9
    $region8: #{tpu_custom_call.1} parent=1 // pred_region
      _
    $region9: #{tpu_custom_call.1} parent=1 // pred_fallthru
      _
    // Predicated region
    $region10: #{tpu_custom_call.1} parent=1 // pred_check
      _
    $region11: #{tpu_custom_call.1} parent=1 // pred_check_branch
      %29 = sbr.rel (0) target = $region13
    $region12: #{tpu_custom_call.1} parent=1 // pred_region
      _
    $region13: #{tpu_custom_call.1} parent=1 // pred_fallthru
      _
    // Predicated region
    $region14: #{tpu_custom_call.1} parent=1 // pred_check
      _
    $region15: #{tpu_custom_call.1} parent=1 // pred_check_branch
      %31 = sbr.rel (0) target = $region17
    $region16: #{tpu_custom_call.1} parent=1 // pred_region
      _
    $region17: #{tpu_custom_call.1} parent=1 // pred_fallthru
      _
    // Predicated region
    $region18: #{tpu_custom_call.1} parent=1 // pred_check
      _
    $region19: #{tpu_custom_call.1} parent=1 // pred_check_branch
      %33 = sbr.rel (0) target = $region21
    $region20: #{tpu_custom_call.1} parent=1 // pred_region
      _
    $region21: #{tpu_custom_call.1} parent=1 // pred_fallthru
      _
    // Predicated region
    $region22: #{tpu_custom_call.1} parent=1 // pred_check
      _
    $region23: #{tpu_custom_call.1} parent=1 // pred_check_branch
      %35 = sbr.rel (0) target = $region25
    $region24: #{tpu_custom_call.1} parent=1 // pred_region
      %36 = dma.done [#allocation9], 128
    $region25: #{tpu_custom_call.1} parent=1 // pred_fallthru
      _
    %p38 = scmp.eq.s32.totalorder 0, 0
    // Predicated region
    $region26: #{tpu_custom_call.1} parent=1 // pred_check
      %p39 = pneg %p38
    $region27: #{tpu_custom_call.1} parent=1 // pred_check_branch
      %41 = sbr.rel (%p39) target = $region29
    $region28: #{tpu_custom_call.1} parent=1 // pred_region
      %v42 = vld [vmem:[#allocation8] sm:$0xf]
      %v43 = vld [vmem:[#allocation8 + $0x4] sm:$0xf]
      %v44 = vld [vmem:[%s5] sm:$0xf]
      %v45 = vld [vmem:[%s5 + $0x4] sm:$0xf]
      %v46 = vld [vmem:[%s5 + $0x8] sm:$0xf]
      %v47 = vld [vmem:[%s5 + $0xc] sm:$0xf]
      %v48 = vld [vmem:[%s5 + $0x10] sm:$0xf]
      %v49 = vld [vmem:[%s5 + $0x14] sm:$0xf]
      %v50 = vld [vmem:[%s5 + $0x18] sm:$0xf]
      %v51 = vld [vmem:[%s5 + $0x1c] sm:$0xf]
      %v52 = vld [vmem:[%s5 + $0x20] sm:$0xf]
      %v53 = vld [vmem:[%s5 + $0x24] sm:$0xf]
      %v54 = vld [vmem:[%s5 + $0x28] sm:$0xf]
      %v55 = vld [vmem:[%s5 + $0x2c] sm:$0xf]
      %v56 = vld [vmem:[%s5 + $0x30] sm:$0xf]
      %v57 = vld [vmem:[%s5 + $0x34] sm:$0xf]
      %v58 = vld [vmem:[%s5 + $0x38] sm:$0xf]
      %v59 = vld [vmem:[%s5 + $0x3c] sm:$0xf]
      %v62 = vunpack.c.l.b16 %v42
      %v63 = vunpack.c.l.b16 %v43
      %v64 = vpack.c.b16 %v63, %v62
      %v82 = vunpack.c.l.b16 %v44
      %v83 = vunpack.c.l.b16 %v45
      %v84 = vunpack.c.l.b16 %v46
      %v85 = vunpack.c.l.b16 %v47
      %v86 = vunpack.c.l.b16 %v48
      %v87 = vunpack.c.l.b16 %v49
      %v88 = vunpack.c.l.b16 %v50
      %v89 = vunpack.c.l.b16 %v51
      %v90 = vunpack.c.l.b16 %v52
      %v91 = vunpack.c.l.b16 %v53
      %v92 = vunpack.c.l.b16 %v54
      %v93 = vunpack.c.l.b16 %v55
      %v94 = vunpack.c.l.b16 %v56
      %v95 = vunpack.c.l.b16 %v57
      %v96 = vunpack.c.l.b16 %v58
      %v97 = vunpack.c.l.b16 %v59
      %v98 = vpack.c.b16 %v83, %v82
      %v99 = vpack.c.b16 %v85, %v84
      %v100 = vpack.c.b16 %v87, %v86
      %v101 = vpack.c.b16 %v89, %v88
      %v102 = vpack.c.b16 %v91, %v90
      %v103 = vpack.c.b16 %v93, %v92
      %v104 = vpack.c.b16 %v95, %v94
      %v105 = vpack.c.b16 %v97, %v96
      %114 = vmatprep.subr.bf16.mxu0 0
      %115 = vmatpush1.bf16.msra.mxu0 %v105
      %116 = vmatprep.subr.bf16.mxu0 0
      %117 = vmatpush1.bf16.msra.mxu0 %v104
      %118 = vmatprep.subr.bf16.mxu0 0
      %119 = vmatpush1.bf16.msra.mxu0 %v103
      %120 = vmatprep.subr.bf16.mxu0 0
      %121 = vmatpush1.bf16.msra.mxu0 %v102
      %122 = vmatprep.subr.bf16.mxu0 0
      %123 = vmatpush1.bf16.msra.mxu0 %v101
      %124 = vmatprep.subr.bf16.mxu0 0
      %125 = vmatpush1.bf16.msra.mxu0 %v100
      %126 = vmatprep.subr.bf16.mxu0 0
      %127 = vmatpush1.bf16.msra.mxu0 %v99
      %128 = vmatprep.subr.bf16.mxu0 0
      %129 = vmatpush1.bf16.msra.mxu0 %v98
      %130 = vmatprep.subr.bf16.mxu0 0
      %131 = vmatpush2.bf16.msra.mxu0 0
      %132 = vmatprep.subr.bf16.mxu0 0
      %133 = vmatpush2.bf16.msra.mxu0 0
      %134 = vmatprep.subr.bf16.mxu0 0
      %135 = vmatpush2.bf16.msra.mxu0 0
      %136 = vmatprep.subr.bf16.mxu0 0
      %137 = vmatpush2.bf16.msra.mxu0 0
      %138 = vmatprep.subr.bf16.mxu0 0
      %139 = vmatpush2.bf16.msra.mxu0 0
      %140 = vmatprep.subr.bf16.mxu0 0
      %141 = vmatpush2.bf16.msra.mxu0 0
      %142 = vmatprep.subr.bf16.mxu0 0
      %143 = vmatpush2.bf16.msra.mxu0 0
      %144 = vmatprep.subr.bf16.mxu0 0
      %145 = vmatpush2.bf16.msra.mxu0 0
      %146 = vmatprep.mubr.bf16.mxu0 0
      %147 = vmatmul.mubr.bf16.gmra.mxu0 %v64
      %v148 = vpop.f32.mrf.mxu0
      %v149 = vadd.f32 0.0, %v148
      %v150 = vpop.f32.mrf.mxu0
      %v151 = vpop.f32.mrf.mxu0
      %v152 = vadd.f32 0.0, %v151
      %v153 = vpop.f32.mrf.mxu0
      %154 = vdwg.mxu0
      %157 = vrot.lane.b32.xlu0 %v149, 127
      %v158 = vpop.permute.xlu0 %157
      %159 = vrot.lane.b32.xlu0 %v152, 127
      %v160 = vpop.permute.xlu0 %159
      %v163 = vadd.f32 %v149, %v158
      %v164 = vadd.f32 %v152, %v160
      %vm165 = vcmp.gt.f32.partialorder %v163, 0.0
      %vm166 = vcmp.gt.f32.partialorder %v164, 0.0
      %v167 = vmul.f32 %v163, 0.2
      %v168 = vmul.f32 %v164, 0.2
      %v169 = vsel %vm165, %v163, %v167
      %v170 = vsel %vm166, %v164, %v168
      %vm171 = vcmask 7168
      %172 = vst.msk [vmem:[#allocation4] sm:$0xff] %vm171, %v149
      %173 = vst.msk [vmem:[#allocation4 + $0x8] sm:$0xff] %vm171, %v152
      %174 = vst.msk [vmem:[#allocation2] sm:$0xff] %vm171, %v169
      %175 = vst.msk [vmem:[#allocation2 + $0x8] sm:$0xff] %vm171, %v170
      %176 = vst.msk [vmem:[#allocation3] sm:$0xff] %vm171, 1.0
      %177 = vst.msk [vmem:[#allocation3 + $0x8] sm:$0xff] %vm171, 1.0
      %v178 = vunpack.c.l.bf16 %v42
      %v179 = vunpack.c.l.bf16 %v43
      %180 = vst [vmem:[#allocation5] sm:$0xff] %v178
      %181 = vst [vmem:[#allocation5 + $0x8] sm:$0xff] %v179
    $region29: #{tpu_custom_call.1} parent=1 // pred_fallthru
      _
    %s182 = sadd.s32 0, 0
    %s183 = sld [smem:[#allocation7 + %s182]]
    %p184 = scmp.gt.s32.totalorder %s183, 0
    // Predicated region
    $region30: #{tpu_custom_call.1} parent=1 // pred_check
      %p185 = pneg %p184
    $region31: #{tpu_custom_call.1} parent=1 // pred_check_branch
      %187 = sbr.rel (%p185) target = $region33
    $region32: #{tpu_custom_call.1} parent=1 // pred_region
      %v188 = vld [vmem:[%s4] sm:$0x3]
      %v189 = vld [vmem:[%s4 + $0x2] sm:$0x3]
      %v190 = vunpack.c.0.s8 %v188
      %v191 = vunpack.c.0.s8 %v189
      %v192 = vcvt.s32.f32 %v190
      %v193 = vcvt.s32.f32 %v191
      %v194 = vld [vmem:[#allocation4] sm:$0xff]
      %v195 = vld [vmem:[#allocation4 + $0x8] sm:$0xff]
      %v196 = vld [vmem:[%s3] sm:$0x1]
      %198 = vset.pattern.permute.xlu0 0
      %199 = vperm.xlu0 %198, %v194
      %v200 = vpop.permute.xlu0 %199
      %203 = vset.pattern.permute.xlu0 0
      %204 = vperm.xlu0 %203, %v195
      %v205 = vpop.permute.xlu0 %204
      %v208 = vlaneseq
      %v209 = vshrl.u32 %v208, 7
      %v210 = vsub.s32 0, %v209
      %v211 = vrot.slane %v196, %v210
      %v213 = vadd.f32 %v200, %v211
      %v214 = vadd.f32 %v205, %v211
      %vm215 = vcmp.gt.f32.partialorder %v213, 0.0
      %vm216 = vcmp.gt.f32.partialorder %v214, 0.0
      %v217 = vmul.f32 %v213, 0.2
      %v218 = vmul.f32 %v214, 0.2
      %v219 = vsel %vm215, %v213, %v217
      %v220 = vsel %vm216, %v214, %v218
      %vm221 = vcmp.gt.f32.partialorder %v192, 0.0
      %vm222 = vcmp.gt.f32.partialorder %v193, 0.0
      %v223 = vsel %vm221, %v219, -9e+15
      %v224 = vsel %vm222, %v220, -9e+15
      %v225 = vld [vmem:[#allocation2] sm:$0xff]
      %v226 = vld [vmem:[#allocation2 + $0x8] sm:$0xff]
      %227 = vmax.xlane.f32.xlu0 %v223
      %v228 = vpop.xlane.xlu0 %227
      %229 = vmax.xlane.f32.xlu0 %v224
      %v230 = vpop.xlane.xlu0 %229
      %v231 = vmax.f32 %v225, %v228
      %v232 = vmax.f32 %v226, %v230
      %v233 = vsub.f32 %v225, %v231
      %v234 = vsub.f32 %v226, %v232
      %v235 = vmul.f32 %v233, 1.442695
      %v236 = vpow.pop %v235
      %v237 = vmul.f32 %v234, 1.442695
      %v238 = vpow.pop %v237
      %240 = vset.pattern.permute.xlu0 0
      %241 = vperm.xlu0 %240, %v231
      %v242 = vpop.permute.xlu0 %241
      %245 = vset.pattern.permute.xlu0 0
      %246 = vperm.xlu0 %245, %v232
      %v247 = vpop.permute.xlu0 %246
      %v249 = vsub.f32 %v223, %v242
      %v250 = vsub.f32 %v224, %v247
      %v251 = vmul.f32 %v249, 1.442695
      %v252 = vpow.pop %v251
      %v253 = vmul.f32 %v250, 1.442695
      %v254 = vpow.pop %v253
      %v255 = vld [vmem:[#allocation3] sm:$0xff]
      %v256 = vld [vmem:[#allocation3 + $0x8] sm:$0xff]
      %v257 = vmul.f32 %v236, %v255
      %v258 = vmul.f32 %v238, %v256
      %259 = vadd.xlane.f32.xlu0 %v252
      %v260 = vpop.xlane.xlu0 %259
      %261 = vadd.xlane.f32.xlu0 %v254
      %v262 = vpop.xlane.xlu0 %261
      %v263 = vadd.f32 %v257, %v260
      %v264 = vadd.f32 %v258, %v262
      %vm265 = vcmask 7168
      %266 = vst.msk [vmem:[#allocation3] sm:$0xff] %vm265, %v263
      %267 = vst.msk [vmem:[#allocation3 + $0x8] sm:$0xff] %vm265, %v264
      %v268 = vpack.c.bf16 %v254, %v252
      %v269 = vld [vmem:[%s2] sm:$0xf]
      %v270 = vld [vmem:[%s2 + $0x4] sm:$0xf]
      %v271 = vld [vmem:[%s2 + $0x8] sm:$0xf]
      %v272 = vld [vmem:[%s2 + $0xc] sm:$0xf]
      %v273 = vld [vmem:[%s2 + $0x10] sm:$0xf]
      %v274 = vld [vmem:[%s2 + $0x14] sm:$0xf]
      %v275 = vld [vmem:[%s2 + $0x18] sm:$0xf]
      %v276 = vld [vmem:[%s2 + $0x1c] sm:$0xf]
      %v277 = vld [vmem:[%s2 + $0x20] sm:$0xf]
      %v278 = vld [vmem:[%s2 + $0x24] sm:$0xf]
      %v279 = vld [vmem:[%s2 + $0x28] sm:$0xf]
      %v280 = vld [vmem:[%s2 + $0x2c] sm:$0xf]
      %v281 = vld [vmem:[%s2 + $0x30] sm:$0xf]
      %v282 = vld [vmem:[%s2 + $0x34] sm:$0xf]
      %v283 = vld [vmem:[%s2 + $0x38] sm:$0xf]
      %v284 = vld [vmem:[%s2 + $0x3c] sm:$0xf]
      %v301 = vunpack.c.l.b16 %v269
      %v302 = vunpack.c.l.b16 %v270
      %v303 = vunpack.c.l.b16 %v271
      %v304 = vunpack.c.l.b16 %v272
      %v305 = vunpack.c.l.b16 %v273
      %v306 = vunpack.c.l.b16 %v274
      %v307 = vunpack.c.l.b16 %v275
      %v308 = vunpack.c.l.b16 %v276
      %v309 = vunpack.c.l.b16 %v277
      %v310 = vunpack.c.l.b16 %v278
      %v311 = vunpack.c.l.b16 %v279
      %v312 = vunpack.c.l.b16 %v280
      %v313 = vunpack.c.l.b16 %v281
      %v314 = vunpack.c.l.b16 %v282
      %v315 = vunpack.c.l.b16 %v283
      %v316 = vunpack.c.l.b16 %v284
      %v317 = vpack.c.b16 %v302, %v301
      %v318 = vpack.c.b16 %v304, %v303
      %v319 = vpack.c.b16 %v306, %v305
      %v320 = vpack.c.b16 %v308, %v307
      %v321 = vpack.c.b16 %v310, %v309
      %v322 = vpack.c.b16 %v312, %v311
      %v323 = vpack.c.b16 %v314, %v313
      %v324 = vpack.c.b16 %v316, %v315
      %333 = vmatprep.subr.bf16.mxu0 0
      %334 = vmatpush1.bf16.msra.mxu0 %v324
      %335 = vmatprep.subr.bf16.mxu0 0
      %336 = vmatpush1.bf16.msra.mxu0 %v323
      %337 = vmatprep.subr.bf16.mxu0 0
      %338 = vmatpush1.bf16.msra.mxu0 %v322
      %339 = vmatprep.subr.bf16.mxu0 0
      %340 = vmatpush1.bf16.msra.mxu0 %v321
      %341 = vmatprep.subr.bf16.mxu0 0
      %342 = vmatpush1.bf16.msra.mxu0 %v320
      %343 = vmatprep.subr.bf16.mxu0 0
      %344 = vmatpush1.bf16.msra.mxu0 %v319
      %345 = vmatprep.subr.bf16.mxu0 0
      %346 = vmatpush1.bf16.msra.mxu0 %v318
      %347 = vmatprep.subr.bf16.mxu0 0
      %348 = vmatpush1.bf16.msra.mxu0 %v317
      %349 = vmatprep.subr.bf16.mxu0 0
      %350 = vmatpush2.bf16.msra.mxu0 0
      %351 = vmatprep.subr.bf16.mxu0 0
      %352 = vmatpush2.bf16.msra.mxu0 0
      %353 = vmatprep.subr.bf16.mxu0 0
      %354 = vmatpush2.bf16.msra.mxu0 0
      %355 = vmatprep.subr.bf16.mxu0 0
      %356 = vmatpush2.bf16.msra.mxu0 0
      %357 = vmatprep.subr.bf16.mxu0 0
      %358 = vmatpush2.bf16.msra.mxu0 0
      %359 = vmatprep.subr.bf16.mxu0 0
      %360 = vmatpush2.bf16.msra.mxu0 0
      %361 = vmatprep.subr.bf16.mxu0 0
      %362 = vmatpush2.bf16.msra.mxu0 0
      %363 = vmatprep.subr.bf16.mxu0 0
      %364 = vmatpush2.bf16.msra.mxu0 0
      %365 = vmatprep.mubr.bf16.mxu0 0
      %366 = vmatmul.mubr.bf16.gmra.mxu0 %v268
      %v367 = vpop.f32.mrf.mxu0
      %v368 = vadd.f32 0.0, %v367
      %v369 = vpop.f32.mrf.mxu0
      %v370 = vpop.f32.mrf.mxu0
      %v371 = vadd.f32 0.0, %v370
      %v372 = vpop.f32.mrf.mxu0
      %373 = vdwg.mxu0
      %v374 = vld [vmem:[#allocation5] sm:$0xff]
      %v375 = vld [vmem:[#allocation5 + $0x8] sm:$0xff]
      %377 = vset.pattern.permute.xlu0 0
      %378 = vperm.xlu0 %377, %v236
      %v379 = vpop.permute.xlu0 %378
      %382 = vset.pattern.permute.xlu0 0
      %383 = vperm.xlu0 %382, %v238
      %v384 = vpop.permute.xlu0 %383
      %v386 = vmul.f32 %v379, %v374
      %v387 = vmul.f32 %v384, %v375
      %v388 = vadd.f32 %v386, %v368
      %v389 = vadd.f32 %v387, %v371
      %390 = vst [vmem:[#allocation5] sm:$0xff] %v388
      %391 = vst [vmem:[#allocation5 + $0x8] sm:$0xff] %v389
      %392 = vst.msk [vmem:[#allocation2] sm:$0xff] %vm265, %v231
      %393 = vst.msk [vmem:[#allocation2 + $0x8] sm:$0xff] %vm265, %v232
    $region33: #{tpu_custom_call.1} parent=1 // pred_fallthru
      _
    // Predicated region
    $region34: #{tpu_custom_call.1} parent=1 // pred_check
      %p394 = pneg %p38
    $region35: #{tpu_custom_call.1} parent=1 // pred_check_branch
      %396 = sbr.rel (%p394) target = $region37
    $region36: #{tpu_custom_call.1} parent=1 // pred_region
      %v397 = vld [vmem:[#allocation3] sm:$0xff]
      %v398 = vld [vmem:[#allocation3 + $0x8] sm:$0xff]
      %v399 = vrcp.pop %v397
      %v400 = vrcp.pop %v398
      %v401 = vld [vmem:[#allocation5] sm:$0xff]
      %v402 = vld [vmem:[#allocation5 + $0x8] sm:$0xff]
      %404 = vset.pattern.permute.xlu0 0
      %405 = vperm.xlu0 %404, %v399
      %v406 = vpop.permute.xlu0 %405
      %409 = vset.pattern.permute.xlu0 0
      %410 = vperm.xlu0 %409, %v400
      %v411 = vpop.permute.xlu0 %410
      %v413 = vmul.f32 %v401, %v406
      %v414 = vmul.f32 %v402, %v411
      %vm415 = vcmp.gt.f32.partialorder %v413, 0.0
      %vm416 = vcmp.gt.f32.partialorder %v414, 0.0
      %v417 = vmul.f32 %v413, 1.442695
      %v418 = vpow.pop %v417
      %v419 = vmul.f32 %v414, 1.442695
      %v420 = vpow.pop %v419
      %v421 = vsub.f32 %v418, 1.0
      %v422 = vsub.f32 %v420, 1.0
      %v423 = vsel %vm415, %v413, %v421
      %v424 = vsel %vm416, %v414, %v422
      %425 = vst [vmem:[#allocation11] sm:$0xff] %v423
      %426 = vst [vmem:[#allocation11 + $0x8] sm:$0xff] %v424
    $region37: #{tpu_custom_call.1} parent=1 // pred_fallthru
      _
    // Predicated region
    $region38: #{tpu_custom_call.1} parent=1 // pred_check
      _
    $region39: #{tpu_custom_call.1} parent=1 // pred_check_branch
      %428 = sbr.rel (0) target = $region41
    $region40: #{tpu_custom_call.1} parent=1 // pred_region
      %s430 = ssub.s32 256, 256
      %431 = vsyncadd [#allocation10], %s430
      %s432 = sshll.u32 [#allocation11], 4
      %s433 = int_to_ptr.vmem [resolvable:$true] %s432
      %438 = dma.vmem_to_hbm [thread:$0]  %s433, 256, %s6, [#allocation10], 128, 128, 8
    $region41: #{tpu_custom_call.1} parent=1 // pred_fallthru
      _
    // Predicated region
    $region42: #{tpu_custom_call.1} parent=1 // pred_check
      _
    $region43: #{tpu_custom_call.1} parent=1 // pred_check_branch
      %440 = sbr.rel (0) target = $region45
    $region44: #{tpu_custom_call.1} parent=1 // pred_region
      %441 = dma.done [#allocation10], 256
    $region45: #{tpu_custom_call.1} parent=1 // pred_fallthru
      _
    %442 = vsyncpa [#allocation9], 1
    %443 = vsyncpa [#allocation10], 1

</llo_original>
